<compile_context>
chip_gen: v7x
topology: tpu7x:2x2x1
jax: 0.10.0
libtpu: 0.0.40
codegen_flags: <defaults>
</compile_context>

<pallas_src>
from functools import partial

import jax
import jax.numpy as jnp
from jax.experimental import pallas as pl
from jax.experimental.pallas import tpu as pltpu

EPS = 1e-5


def _round_up(n, m):
    return ((n + m - 1) // m) * m


def _pad_to(a, shape):
    pads = [(0, s - d) for d, s in zip(a.shape, shape)]
    return jnp.pad(a, pads)


# ---------------------------------------------------------------------------
# Kernel
# ---------------------------------------------------------------------------
def _bn_relu(h, gamma, beta):
    """Training-mode BatchNorm1d (biased batch variance) + ReLU, all f32.

    gamma/beta are (1, P) rows; padded features have gamma=beta=0 so they stay 0.
    """
    mean = jnp.mean(h, axis=0, keepdims=True)                         # (1, P)
    var = jnp.mean(h * h, axis=0, keepdims=True) - mean * mean        # one-pass biased variance
    var = jnp.maximum(var, 0.0)                                       # NaN guard (cancellation)
    scale = gamma * jax.lax.rsqrt(var + EPS)                          # rsqrt on EUP
    shift = beta - mean * scale
    return jnp.maximum(h * scale + shift, 0.0)                        # 2 full-tile VPU ops + max


def feedforward_kernel(x_ref, w_ref, misc_ref, out_ref):
    """x_ref: (B, P) bf16; w_ref: (4, P, P) bf16; misc_ref: (8, P) f32; out_ref: (B, P) f32."""
    mm = w_ref.dtype  # bf16 operands, f32 accumulation on the MXU

    # Block 1: Linear (bias dropped - cancelled by BN mean) + BN + ReLU
    h = jnp.dot(x_ref[...], w_ref[0], preferred_element_type=jnp.float32)
    h = _bn_relu(h, misc_ref[0:1, :], misc_ref[1:2, :])

    # Block 2
    h = jnp.dot(h.astype(mm), w_ref[1], preferred_element_type=jnp.float32)
    h = _bn_relu(h, misc_ref[2:3, :], misc_ref[3:4, :])

    # Block 3
    h = jnp.dot(h.astype(mm), w_ref[2], preferred_element_type=jnp.float32)
    h = _bn_relu(h, misc_ref[4:5, :], misc_ref[5:6, :])

    # Output Linear (keeps its bias, row 6 of misc); lane-dense (128-padded) store.
    out = jnp.dot(h.astype(mm), w_ref[3], preferred_element_type=jnp.float32) + misc_ref[6:7, :]
    out_ref[...] = out.astype(out_ref.dtype)


# ---------------------------------------------------------------------------
# One-time parameter preparation (hoisted OUT of the per-call path)
# ---------------------------------------------------------------------------
def prepare_kernel_params(params, *, matmul_dtype=jnp.bfloat16):
    """Pad/pack/cast all parameters once.  Returns (w_stack, misc, meta).

    All feature dims are zero-padded to a single common lane-dense width P (multiple of 128)
    so the four weights stack into one (4, P, P) buffer.  Zero padding is numerically exact:
    padded weight rows/cols, padded gamma/beta and padded b4 are all zero, so padded features
    remain exactly 0 through every block.  At toy scale P=128 -> 128 KiB of bf16 weights.
    """
    (w1, b1, g1, be1, w2, b2, g2, be2, w3, b3, g3, be3, w4, b4) = params
    in_s, h_s = w1.shape
    h2_s = w2.shape[1]
    c_s = w4.shape[1]
    p = max(_round_up(d, 128) for d in (in_s, h_s, h2_s, c_s))  # common lane-dense width

    w_stack = jnp.stack(
        [_pad_to(w, (p, p)).astype(matmul_dtype) for w in (w1, w2, w3, w4)], axis=0
    )  # (4, P, P) bf16

    misc = jnp.zeros((8, p), jnp.float32)  # rows: g1, be1, g2, be2, g3, be3, b4, unused
    for row, vec in enumerate((g1, be1, g2, be2, g3, be3, b4)):
        misc = misc.at[row, : vec.shape[0]].set(vec)

    meta = dict(in_size=in_s, num_classes=c_s, p=p, matmul_dtype=matmul_dtype)
    return w_stack, misc, meta


# ---------------------------------------------------------------------------
# Forward: only x is padded/cast per call; parameters are pre-packed.
# ---------------------------------------------------------------------------
@partial(jax.jit, static_argnames=("num_classes", "matmul_dtype"))
def _forward(x, w_stack, misc, *, num_classes, matmul_dtype):
    batch = x.shape[0]
    p = w_stack.shape[1]

    x_p = _pad_to(x, (batch, p)).astype(matmul_dtype)  # the only per-call prep

    flops = 2 * batch * 4 * p * p
    transcendentals = 3 * p
    bytes_accessed = (
        x_p.size * x_p.dtype.itemsize
        + w_stack.size * w_stack.dtype.itemsize
        + misc.size * misc.dtype.itemsize
        + batch * p * 4
    )

    vmem = pl.BlockSpec(memory_space=pltpu.MemorySpace.VMEM)
    out_p = pl.pallas_call(
        feedforward_kernel,
        out_shape=jax.ShapeDtypeStruct((batch, p), jnp.float32),
        in_specs=[vmem, vmem, vmem],
        out_specs=vmem,
        cost_estimate=pl.CostEstimate(
            flops=flops, transcendentals=transcendentals, bytes_accessed=bytes_accessed
        ),
    )(x_p, w_stack, misc)

    # Slice the lane-dense output back to the logical class count (cheap at these shapes;
    # fold into downstream consumers if classes/batch grow).
    return out_p[:, :num_classes]


def feedforward(x, kernel_params):
    """x: [batch, input_size] f32.  kernel_params: output of prepare_kernel_params."""
    w_stack, misc, meta = kernel_params
    return _forward(
        x, w_stack, misc, num_classes=meta["num_classes"], matmul_dtype=meta["matmul_dtype"]
    )


# ---------------------------------------------------------------------------
# Parameter init (PyTorch-default-style) and pure-JAX reference
# ---------------------------------------------------------------------------
def init_params(key, input_size, hidden_size, num_classes):
    """Linear weights/biases ~ U(+-1/sqrt(fan_in)); BN gamma=1, beta=0.
    Weights stored [in, out] so the kernel computes h = x @ W (+ b)."""
    h2 = hidden_size // 2
    dims = [
        (input_size, hidden_size),
        (hidden_size, h2),
        (h2, hidden_size),
        (hidden_size, num_classes),
    ]
    keys = jax.random.split(key, 2 * len(dims))
    linears = []
    for li, (fan_in, fan_out) in enumerate(dims):
        bound = 1.0 / float(fan_in) ** 0.5
        w = jax.random.uniform(keys[2 * li], (fan_in, fan_out), jnp.float32, -bound, bound)
        b = jax.random.uniform(keys[2 * li + 1], (fan_out,), jnp.float32, -bound, bound)
        linears.append((w, b))

    flat = []
    for li, n in enumerate([hidden_size, h2, hidden_size]):
        w, b = linears[li]
        flat += [w, b, jnp.ones((n,), jnp.float32), jnp.zeros((n,), jnp.float32)]
    flat += list(linears[3])  # output Linear (w4, b4)
    return tuple(flat)


def reference(x, params, matmul_dtype=jnp.bfloat16):
    """Exact PyTorch FeedForward structure (all biases kept, training-mode BN with biased
    variance, two-pass form).  Matmul operands are cast to the same dtype the kernel feeds
    the MXU so the comparison is apples-to-apples; BN math stays f32."""
    (w1, b1, g1, be1, w2, b2, g2, be2, w3, b3, g3, be3, w4, b4) = params

    def lin(h, w, b):
        return (
            jnp.dot(
                h.astype(matmul_dtype), w.astype(matmul_dtype), preferred_element_type=jnp.float32
            )
            + b
        )

    def bn_relu(h, g, be):
        m = jnp.mean(h, axis=0, keepdims=True)
        v = jnp.mean((h - m) ** 2, axis=0, keepdims=True)
        return jnp.maximum(g * (h - m) / jnp.sqrt(v + EPS) + be, 0.0)

    h = bn_relu(lin(x, w1, b1), g1, be1)
    h = bn_relu(lin(h, w2, b2), g2, be2)
    h = bn_relu(lin(h, w3, b3), g3, be3)
    return lin(h, w4, b4)


if __name__ == "__main__":
    # Small shapes consistent with the module: batch=8 (multiple of 8 for BN sublanes),
    # input_size=16, hidden=32, classes=4.
    batch, input_size, hidden_size, num_classes = 8, 16, 32, 4

    key = jax.random.PRNGKey(0)
    k_x, k_p = jax.random.split(key)
    x = jax.random.normal(k_x, (batch, input_size), jnp.float32)
    params = init_params(k_p, input_size, hidden_size, num_classes)

    # One-time prep (padding / packing / bf16 cast) — outside the per-call path.
    kernel_params = prepare_kernel_params(params)
    kernel_params = jax.tree.map(
        lambda a: jax.block_until_ready(a) if isinstance(a, jax.Array) else a, kernel_params
    )

    out = jax.block_until_ready(feedforward(x, kernel_params))
    ref = jax.block_until_ready(reference(x, params))

    assert out.shape == (batch, num_classes)
    max_diff = float(jnp.max(jnp.abs(out - ref)))
    assert jnp.allclose(out, ref, atol=2e-3, rtol=2e-3), (
        f"Pallas output mismatch vs reference (max abs diff {max_diff})"
    )

    print("KERNEL_OK")
</pallas_src>

<mosaic_0001>
module attributes {stable_mosaic.version = 11 : i64} {
  func.func @feedforward_kernel(%arg0: memref<8x128xbf16, #tpu.memory_space<vmem>>, %arg1: memref<4x128x128xbf16, #tpu.memory_space<vmem>>, %arg2: memref<8x128xf32, #tpu.memory_space<vmem>>, %arg3: memref<8x128xf32, #tpu.memory_space<vmem>>) attributes {dimension_semantics = [], scalar_prefetch = 0 : i64, scratch_operands = 0 : i64, tpu.core_type = #tpu.core_type<tc>} {
    %c0 = arith.constant 0 : index
    %c0_0 = arith.constant 0 : index
    %0 = vector.load %arg0[%c0, %c0_0] : memref<8x128xbf16, #tpu.memory_space<vmem>>, vector<8x128xbf16>
    %c0_1 = arith.constant 0 : index
    %c0_2 = arith.constant 0 : index
    %c0_3 = arith.constant 0 : index
    %1 = vector.load %arg1[%c0_1, %c0_2, %c0_3] : memref<4x128x128xbf16, #tpu.memory_space<vmem>>, vector<1x128x128xbf16>
    %2 = vector.shape_cast %1 : vector<1x128x128xbf16> to vector<128x128xbf16>
    %cst = arith.constant dense<0.000000e+00> : vector<8x128xf32>
    %3 = tpu.matmul %0, %2, %cst {dimension_numbers = #tpu.dot_dimension_numbers<[1], [0], [0], [1], [0, 0, 1, 1], [], []>} : vector<8x128xbf16>, vector<128x128xbf16>, vector<8x128xf32> -> vector<8x128xf32>
    %c0_4 = arith.constant 0 : index
    %c0_5 = arith.constant 0 : index
    %4 = vector.load %arg2[%c0_4, %c0_5] : memref<8x128xf32, #tpu.memory_space<vmem>>, vector<1x128xf32>
    %c1 = arith.constant 1 : index
    %c0_6 = arith.constant 0 : index
    %5 = vector.load %arg2[%c1, %c0_6] : memref<8x128xf32, #tpu.memory_space<vmem>>, vector<1x128xf32>
    %cst_7 = arith.constant dense<0.000000e+00> : vector<128xf32>
    %6 = vector.multi_reduction <add>, %3, %cst_7 [0] : vector<8x128xf32> to vector<128xf32>
    %7 = vector.shape_cast %6 : vector<128xf32> to vector<1x128xf32>
    %cst_8 = arith.constant 8.000000e+00 : f32
    %8 = vector.broadcast %cst_8 : f32 to vector<1x128xf32>
    %9 = arith.divf %7, %8 : vector<1x128xf32>
    %10 = arith.mulf %3, %3 : vector<8x128xf32>
    %cst_9 = arith.constant dense<0.000000e+00> : vector<128xf32>
    %11 = vector.multi_reduction <add>, %10, %cst_9 [0] : vector<8x128xf32> to vector<128xf32>
    %12 = vector.shape_cast %11 : vector<128xf32> to vector<1x128xf32>
    %cst_10 = arith.constant 8.000000e+00 : f32
    %13 = vector.broadcast %cst_10 : f32 to vector<1x128xf32>
    %14 = arith.divf %12, %13 : vector<1x128xf32>
    %15 = arith.mulf %9, %9 : vector<1x128xf32>
    %16 = arith.subf %14, %15 : vector<1x128xf32>
    %cst_11 = arith.constant 0.000000e+00 : f32
    %17 = vector.broadcast %cst_11 : f32 to vector<1x128xf32>
    %18 = arith.maximumf %16, %17 : vector<1x128xf32>
    %cst_12 = arith.constant 9.99999974E-6 : f32
    %19 = vector.broadcast %cst_12 : f32 to vector<1x128xf32>
    %20 = arith.addf %18, %19 : vector<1x128xf32>
    %21 = math.rsqrt %20 : vector<1x128xf32>
    %22 = arith.mulf %4, %21 : vector<1x128xf32>
    %23 = arith.mulf %9, %22 : vector<1x128xf32>
    %24 = arith.subf %5, %23 : vector<1x128xf32>
    %25 = vector.broadcast %22 : vector<1x128xf32> to vector<8x128xf32>
    %26 = arith.mulf %3, %25 : vector<8x128xf32>
    %27 = vector.broadcast %24 : vector<1x128xf32> to vector<8x128xf32>
    %28 = arith.addf %26, %27 : vector<8x128xf32>
    %cst_13 = arith.constant 0.000000e+00 : f32
    %29 = vector.broadcast %cst_13 : f32 to vector<8x128xf32>
    %30 = arith.maximumf %28, %29 : vector<8x128xf32>
    %31 = arith.truncf %30 : vector<8x128xf32> to vector<8x128xbf16>
    %c1_14 = arith.constant 1 : index
    %c0_15 = arith.constant 0 : index
    %c0_16 = arith.constant 0 : index
    %32 = vector.load %arg1[%c1_14, %c0_15, %c0_16] : memref<4x128x128xbf16, #tpu.memory_space<vmem>>, vector<1x128x128xbf16>
    %33 = vector.shape_cast %32 : vector<1x128x128xbf16> to vector<128x128xbf16>
    %cst_17 = arith.constant dense<0.000000e+00> : vector<8x128xf32>
    %34 = tpu.matmul %31, %33, %cst_17 {dimension_numbers = #tpu.dot_dimension_numbers<[1], [0], [0], [1], [0, 0, 1, 1], [], []>} : vector<8x128xbf16>, vector<128x128xbf16>, vector<8x128xf32> -> vector<8x128xf32>
    %c2 = arith.constant 2 : index
    %c0_18 = arith.constant 0 : index
    %35 = vector.load %arg2[%c2, %c0_18] : memref<8x128xf32, #tpu.memory_space<vmem>>, vector<1x128xf32>
    %c3 = arith.constant 3 : index
    %c0_19 = arith.constant 0 : index
    %36 = vector.load %arg2[%c3, %c0_19] : memref<8x128xf32, #tpu.memory_space<vmem>>, vector<1x128xf32>
    %cst_20 = arith.constant dense<0.000000e+00> : vector<128xf32>
    %37 = vector.multi_reduction <add>, %34, %cst_20 [0] : vector<8x128xf32> to vector<128xf32>
    %38 = vector.shape_cast %37 : vector<128xf32> to vector<1x128xf32>
    %cst_21 = arith.constant 8.000000e+00 : f32
    %39 = vector.broadcast %cst_21 : f32 to vector<1x128xf32>
    %40 = arith.divf %38, %39 : vector<1x128xf32>
    %41 = arith.mulf %34, %34 : vector<8x128xf32>
    %cst_22 = arith.constant dense<0.000000e+00> : vector<128xf32>
    %42 = vector.multi_reduction <add>, %41, %cst_22 [0] : vector<8x128xf32> to vector<128xf32>
    %43 = vector.shape_cast %42 : vector<128xf32> to vector<1x128xf32>
    %cst_23 = arith.constant 8.000000e+00 : f32
    %44 = vector.broadcast %cst_23 : f32 to vector<1x128xf32>
    %45 = arith.divf %43, %44 : vector<1x128xf32>
    %46 = arith.mulf %40, %40 : vector<1x128xf32>
    %47 = arith.subf %45, %46 : vector<1x128xf32>
    %cst_24 = arith.constant 0.000000e+00 : f32
    %48 = vector.broadcast %cst_24 : f32 to vector<1x128xf32>
    %49 = arith.maximumf %47, %48 : vector<1x128xf32>
    %cst_25 = arith.constant 9.99999974E-6 : f32
    %50 = vector.broadcast %cst_25 : f32 to vector<1x128xf32>
    %51 = arith.addf %49, %50 : vector<1x128xf32>
    %52 = math.rsqrt %51 : vector<1x128xf32>
    %53 = arith.mulf %35, %52 : vector<1x128xf32>
    %54 = arith.mulf %40, %53 : vector<1x128xf32>
    %55 = arith.subf %36, %54 : vector<1x128xf32>
    %56 = vector.broadcast %53 : vector<1x128xf32> to vector<8x128xf32>
    %57 = arith.mulf %34, %56 : vector<8x128xf32>
    %58 = vector.broadcast %55 : vector<1x128xf32> to vector<8x128xf32>
    %59 = arith.addf %57, %58 : vector<8x128xf32>
    %cst_26 = arith.constant 0.000000e+00 : f32
    %60 = vector.broadcast %cst_26 : f32 to vector<8x128xf32>
    %61 = arith.maximumf %59, %60 : vector<8x128xf32>
    %62 = arith.truncf %61 : vector<8x128xf32> to vector<8x128xbf16>
    %c2_27 = arith.constant 2 : index
    %c0_28 = arith.constant 0 : index
    %c0_29 = arith.constant 0 : index
    %63 = vector.load %arg1[%c2_27, %c0_28, %c0_29] : memref<4x128x128xbf16, #tpu.memory_space<vmem>>, vector<1x128x128xbf16>
    %64 = vector.shape_cast %63 : vector<1x128x128xbf16> to vector<128x128xbf16>
    %cst_30 = arith.constant dense<0.000000e+00> : vector<8x128xf32>
    %65 = tpu.matmul %62, %64, %cst_30 {dimension_numbers = #tpu.dot_dimension_numbers<[1], [0], [0], [1], [0, 0, 1, 1], [], []>} : vector<8x128xbf16>, vector<128x128xbf16>, vector<8x128xf32> -> vector<8x128xf32>
    %c4 = arith.constant 4 : index
    %c0_31 = arith.constant 0 : index
    %66 = vector.load %arg2[%c4, %c0_31] : memref<8x128xf32, #tpu.memory_space<vmem>>, vector<1x128xf32>
    %c5 = arith.constant 5 : index
    %c0_32 = arith.constant 0 : index
    %67 = vector.load %arg2[%c5, %c0_32] : memref<8x128xf32, #tpu.memory_space<vmem>>, vector<1x128xf32>
    %cst_33 = arith.constant dense<0.000000e+00> : vector<128xf32>
    %68 = vector.multi_reduction <add>, %65, %cst_33 [0] : vector<8x128xf32> to vector<128xf32>
    %69 = vector.shape_cast %68 : vector<128xf32> to vector<1x128xf32>
    %cst_34 = arith.constant 8.000000e+00 : f32
    %70 = vector.broadcast %cst_34 : f32 to vector<1x128xf32>
    %71 = arith.divf %69, %70 : vector<1x128xf32>
    %72 = arith.mulf %65, %65 : vector<8x128xf32>
    %cst_35 = arith.constant dense<0.000000e+00> : vector<128xf32>
    %73 = vector.multi_reduction <add>, %72, %cst_35 [0] : vector<8x128xf32> to vector<128xf32>
    %74 = vector.shape_cast %73 : vector<128xf32> to vector<1x128xf32>
    %cst_36 = arith.constant 8.000000e+00 : f32
    %75 = vector.broadcast %cst_36 : f32 to vector<1x128xf32>
    %76 = arith.divf %74, %75 : vector<1x128xf32>
    %77 = arith.mulf %71, %71 : vector<1x128xf32>
    %78 = arith.subf %76, %77 : vector<1x128xf32>
    %cst_37 = arith.constant 0.000000e+00 : f32
    %79 = vector.broadcast %cst_37 : f32 to vector<1x128xf32>
    %80 = arith.maximumf %78, %79 : vector<1x128xf32>
    %cst_38 = arith.constant 9.99999974E-6 : f32
    %81 = vector.broadcast %cst_38 : f32 to vector<1x128xf32>
    %82 = arith.addf %80, %81 : vector<1x128xf32>
    %83 = math.rsqrt %82 : vector<1x128xf32>
    %84 = arith.mulf %66, %83 : vector<1x128xf32>
    %85 = arith.mulf %71, %84 : vector<1x128xf32>
    %86 = arith.subf %67, %85 : vector<1x128xf32>
    %87 = vector.broadcast %84 : vector<1x128xf32> to vector<8x128xf32>
    %88 = arith.mulf %65, %87 : vector<8x128xf32>
    %89 = vector.broadcast %86 : vector<1x128xf32> to vector<8x128xf32>
    %90 = arith.addf %88, %89 : vector<8x128xf32>
    %cst_39 = arith.constant 0.000000e+00 : f32
    %91 = vector.broadcast %cst_39 : f32 to vector<8x128xf32>
    %92 = arith.maximumf %90, %91 : vector<8x128xf32>
    %93 = arith.truncf %92 : vector<8x128xf32> to vector<8x128xbf16>
    %c3_40 = arith.constant 3 : index
    %c0_41 = arith.constant 0 : index
    %c0_42 = arith.constant 0 : index
    %94 = vector.load %arg1[%c3_40, %c0_41, %c0_42] : memref<4x128x128xbf16, #tpu.memory_space<vmem>>, vector<1x128x128xbf16>
    %95 = vector.shape_cast %94 : vector<1x128x128xbf16> to vector<128x128xbf16>
    %cst_43 = arith.constant dense<0.000000e+00> : vector<8x128xf32>
    %96 = tpu.matmul %93, %95, %cst_43 {dimension_numbers = #tpu.dot_dimension_numbers<[1], [0], [0], [1], [0, 0, 1, 1], [], []>} : vector<8x128xbf16>, vector<128x128xbf16>, vector<8x128xf32> -> vector<8x128xf32>
    %c6 = arith.constant 6 : index
    %c0_44 = arith.constant 0 : index
    %97 = vector.load %arg2[%c6, %c0_44] : memref<8x128xf32, #tpu.memory_space<vmem>>, vector<1x128xf32>
    %98 = vector.broadcast %97 : vector<1x128xf32> to vector<8x128xf32>
    %99 = arith.addf %96, %98 : vector<8x128xf32>
    %c0_45 = arith.constant 0 : index
    %c0_46 = arith.constant 0 : index
    %100 = vector.load %arg3[%c0_45, %c0_46] : memref<8x128xf32, #tpu.memory_space<vmem>>, vector<8x128xf32>
    tpu.vector_store %arg3[%c0_45, %c0_46], %99 {strides = array<i32>} : memref<8x128xf32, #tpu.memory_space<vmem>>, vector<8x128xf32>,
    return
  }
}

</mosaic_0001>

<llo_original>
// kernel: _forward.1
$region0: #{_forward.1}
  #allocation0 [shape = 'u32[]', space=smem, size = 0x4, offset = 0x4, fixed_abs, tag = 'smem constant byte address 0x4 - core index']
  #allocation1 [shape = 'u32[144,128]{1,0:T(1,128)}', space=vmem, size = 0x12000, scoped, tag = 'internal scratch']
  %s0 = inlined_call_operand.vmem [shape: bf16[8,128], index: 0, kind: input, shape index: {}]
  %s1 = inlined_call_operand.hbm [shape: bf16[4,128,128], index: 1, kind: input, shape index: {}]
  %s2 = inlined_call_operand.vmem [shape: f32[8,128], index: 2, kind: input, shape index: {}]
  %s3 = inlined_call_operand.vmem [shape: f32[8,128], index: 3, kind: output, shape index: {}]
  %s4 = sld [smem:[#allocation0]]
  $region26: #{_forward.1} parent=0
    _
  %s6 = ssub.s32 1, %s4
  %s7 = scalar_select 0, %s6, %s4
  $region1: #{_forward.1} parent=0
    #allocation2 [shape = 'u8[131072]{0}', space=vmem, size = 0x20000, scoped, tag = 'input window, operand 1, single buffered']
    #allocation3 [shape = 's32[1]{0}', space=sflag, size = 0x4, scoped, tag = 'scoped memory for _forward.1']
    %8 = vsyncpa [#allocation3], 0
    // Predicated region
    $region2: #{_forward.1} parent=1 // pred_check
      _
    $region3: #{_forward.1} parent=1 // pred_check_branch
      %10 = sbr.rel (0) target = $region5
    $region4: #{_forward.1} parent=1 // pred_region
      _
    $region5: #{_forward.1} parent=1 // pred_fallthru
      _
    // Predicated region
    $region6: #{_forward.1} parent=1 // pred_check
      _
    $region7: #{_forward.1} parent=1 // pred_check_branch
      %12 = sbr.rel (0) target = $region9
    $region8: #{_forward.1} parent=1 // pred_region
      %s14 = ssub.s32 4096, 4096
      %15 = vsyncadd [#allocation3], %s14
      %s16 = sshll.u32 [#allocation2], 4
      %s17 = int_to_ptr.vmem [resolvable:$true] %s16
      %22 = dma.hbm_to_vmem [thread:$0]  %s1, 4096, %s17, [#allocation3], 64, 64, 4
    $region9: #{_forward.1} parent=1 // pred_fallthru
      _
    // Predicated region
    $region10: #{_forward.1} parent=1 // pred_check
      _
    $region11: #{_forward.1} parent=1 // pred_check_branch
      %24 = sbr.rel (0) target = $region13
    $region12: #{_forward.1} parent=1 // pred_region
      _
    $region13: #{_forward.1} parent=1 // pred_fallthru
      _
    // Predicated region
    $region14: #{_forward.1} parent=1 // pred_check
      _
    $region15: #{_forward.1} parent=1 // pred_check_branch
      %26 = sbr.rel (0) target = $region17
    $region16: #{_forward.1} parent=1 // pred_region
      %27 = dma.done [#allocation3], 4096
    $region17: #{_forward.1} parent=1 // pred_fallthru
      _
    %v29 = vld [vmem:[%s0] sm:$0xf]
    %v30 = vld [vmem:[#allocation2] sm:$0xf]
    %v31 = vld [vmem:[#allocation2 + $0x4] sm:$0xf]
    %v32 = vld [vmem:[#allocation2 + $0x8] sm:$0xf]
    %v33 = vld [vmem:[#allocation2 + $0xc] sm:$0xf]
    %v34 = vld [vmem:[#allocation2 + $0x10] sm:$0xf]
    %v35 = vld [vmem:[#allocation2 + $0x14] sm:$0xf]
    %v36 = vld [vmem:[#allocation2 + $0x18] sm:$0xf]
    %v37 = vld [vmem:[#allocation2 + $0x1c] sm:$0xf]
    %v38 = vld [vmem:[#allocation2 + $0x20] sm:$0xf]
    %v39 = vld [vmem:[#allocation2 + $0x24] sm:$0xf]
    %v40 = vld [vmem:[#allocation2 + $0x28] sm:$0xf]
    %v41 = vld [vmem:[#allocation2 + $0x2c] sm:$0xf]
    %v42 = vld [vmem:[#allocation2 + $0x30] sm:$0xf]
    %v43 = vld [vmem:[#allocation2 + $0x34] sm:$0xf]
    %v44 = vld [vmem:[#allocation2 + $0x38] sm:$0xf]
    %v45 = vld [vmem:[#allocation2 + $0x3c] sm:$0xf]
    %v62 = vunpack.c.l.b16 %v30
    %v63 = vunpack.c.l.b16 %v31
    %v64 = vunpack.c.l.b16 %v32
    %v65 = vunpack.c.l.b16 %v33
    %v66 = vunpack.c.l.b16 %v34
    %v67 = vunpack.c.l.b16 %v35
    %v68 = vunpack.c.l.b16 %v36
    %v69 = vunpack.c.l.b16 %v37
    %v70 = vunpack.c.l.b16 %v38
    %v71 = vunpack.c.l.b16 %v39
    %v72 = vunpack.c.l.b16 %v40
    %v73 = vunpack.c.l.b16 %v41
    %v74 = vunpack.c.l.b16 %v42
    %v75 = vunpack.c.l.b16 %v43
    %v76 = vunpack.c.l.b16 %v44
    %v77 = vunpack.c.l.b16 %v45
    %v78 = vpack.c.b16 %v63, %v62
    %v79 = vpack.c.b16 %v65, %v64
    %v80 = vpack.c.b16 %v67, %v66
    %v81 = vpack.c.b16 %v69, %v68
    %v82 = vpack.c.b16 %v71, %v70
    %v83 = vpack.c.b16 %v73, %v72
    %v84 = vpack.c.b16 %v75, %v74
    %v85 = vpack.c.b16 %v77, %v76
    %94 = vmatprep.subr.bf16.mxu0 0
    %95 = vmatpush1.bf16.msra.mxu0 %v78
    %96 = vmatprep.subr.bf16.mxu0 0
    %97 = vmatpush1.bf16.msra.mxu0 %v79
    %98 = vmatprep.subr.bf16.mxu0 0
    %99 = vmatpush1.bf16.msra.mxu0 %v80
    %100 = vmatprep.subr.bf16.mxu0 0
    %101 = vmatpush1.bf16.msra.mxu0 %v81
    %102 = vmatprep.subr.bf16.mxu0 0
    %103 = vmatpush1.bf16.msra.mxu0 %v82
    %104 = vmatprep.subr.bf16.mxu0 0
    %105 = vmatpush1.bf16.msra.mxu0 %v83
    %106 = vmatprep.subr.bf16.mxu0 0
    %107 = vmatpush1.bf16.msra.mxu0 %v84
    %108 = vmatprep.subr.bf16.mxu0 0
    %109 = vmatpush1.bf16.msra.mxu0 %v85
    %110 = vmatprep.subr.bf16.mxu0 0
    %111 = vmatpush1.bf16.msra.mxu0 0
    %112 = vmatprep.subr.bf16.mxu0 0
    %113 = vmatpush1.bf16.msra.mxu0 0
    %114 = vmatprep.subr.bf16.mxu0 0
    %115 = vmatpush1.bf16.msra.mxu0 0
    %116 = vmatprep.subr.bf16.mxu0 0
    %117 = vmatpush1.bf16.msra.mxu0 0
    %118 = vmatprep.subr.bf16.mxu0 0
    %119 = vmatpush1.bf16.msra.mxu0 0
    %120 = vmatprep.subr.bf16.mxu0 0
    %121 = vmatpush1.bf16.msra.mxu0 0
    %122 = vmatprep.subr.bf16.mxu0 0
    %123 = vmatpush1.bf16.msra.mxu0 0
    %124 = vmatprep.subr.bf16.mxu0 0
    %125 = vmatpush1.bf16.msra.mxu0 0
    %126 = vmatprep.mubr.bf16.mxu0 0
    %127 = vmatmul.mubr.bf16.gmra.mrb[0].mxu0 %v29
    %v128 = vpop.f32.mrb[0].mxu0
    %v129 = vadd.f32 0.0, %v128
    %v130 = vpop.f32.mrb[0].mxu0
    %v131 = vpop.f32.mrb[0].mxu0
    %v132 = vpop.f32.mrb[0].mxu0
    %133 = vdwg.mxu0
    %v134 = vld [vmem:[%s2] sm:$0x1]
    %v135 = vld [vmem:[%s2 + $0x1] sm:$0x1]
    %v136 = vrot.slane %v129, 4
    %v137 = vadd.f32 %v129, %v136
    %v138 = vrot.slane %v137, 2
    %v139 = vadd.f32 %v137, %v138
    %v140 = vrot.slane %v139, 1
    %v141 = vadd.f32 %v139, %v140
    %v142 = vrcp.pop 8.0
    %v143 = vmul.f32 %v141, %v142
    %v144 = vmul.f32 %v129, %v129
    %v145 = vrot.slane %v144, 4
    %v146 = vadd.f32 %v144, %v145
    %v147 = vrot.slane %v146, 2
    %v148 = vadd.f32 %v146, %v147
    %v149 = vrot.slane %v148, 1
    %v150 = vadd.f32 %v148, %v149
    %v151 = vmul.f32 %v150, %v142
    %v152 = vmul.f32 %v143, %v143
    %v153 = vsub.f32 %v151, %v152
    %v154 = vmax.f32 %v153, 0.0
    %v155 = vadd.f32 %v154, 1e-05
    %v156 = vrsqrt.pop %v155
    %v157 = vmul.f32 %v134, %v156
    %v158 = vmul.f32 %v143, %v157
    %v159 = vsub.f32 %v135, %v158
    %v160 = vlaneseq
    %v161 = vshrl.u32 %v160, 7
    %v162 = vsub.s32 0, %v161
    %v163 = vrot.slane %v157, %v162
    %v164 = vmul.f32 %v129, %v163
    %v165 = vlaneseq
    %v166 = vshrl.u32 %v165, 7
    %v167 = vsub.s32 0, %v166
    %v168 = vrot.slane %v159, %v167
    %v169 = vadd.f32 %v164, %v168
    %v170 = vmax.f32 %v169, 0.0
    %v171 = vpack.c.bf16 %v170, %v170
    %s172 = scalar_lea.vmem [#allocation2], 64
    %v173 = vld [vmem:[%s172] sm:$0xf]
    %v174 = vld [vmem:[%s172 + $0x4] sm:$0xf]
    %v175 = vld [vmem:[%s172 + $0x8] sm:$0xf]
    %v176 = vld [vmem:[%s172 + $0xc] sm:$0xf]
    %v177 = vld [vmem:[%s172 + $0x10] sm:$0xf]
    %v178 = vld [vmem:[%s172 + $0x14] sm:$0xf]
    %v179 = vld [vmem:[%s172 + $0x18] sm:$0xf]
    %v180 = vld [vmem:[%s172 + $0x1c] sm:$0xf]
    %v181 = vld [vmem:[%s172 + $0x20] sm:$0xf]
    %v182 = vld [vmem:[%s172 + $0x24] sm:$0xf]
    %v183 = vld [vmem:[%s172 + $0x28] sm:$0xf]
    %v184 = vld [vmem:[%s172 + $0x2c] sm:$0xf]
    %v185 = vld [vmem:[%s172 + $0x30] sm:$0xf]
    %v186 = vld [vmem:[%s172 + $0x34] sm:$0xf]
    %v187 = vld [vmem:[%s172 + $0x38] sm:$0xf]
    %v188 = vld [vmem:[%s172 + $0x3c] sm:$0xf]
    %v205 = vunpack.c.l.b16 %v173
    %v206 = vunpack.c.l.b16 %v174
    %v207 = vunpack.c.l.b16 %v175
    %v208 = vunpack.c.l.b16 %v176
    %v209 = vunpack.c.l.b16 %v177
    %v210 = vunpack.c.l.b16 %v178
    %v211 = vunpack.c.l.b16 %v179
    %v212 = vunpack.c.l.b16 %v180
    %v213 = vunpack.c.l.b16 %v181
    %v214 = vunpack.c.l.b16 %v182
    %v215 = vunpack.c.l.b16 %v183
    %v216 = vunpack.c.l.b16 %v184
    %v217 = vunpack.c.l.b16 %v185
    %v218 = vunpack.c.l.b16 %v186
    %v219 = vunpack.c.l.b16 %v187
    %v220 = vunpack.c.l.b16 %v188
    %v221 = vpack.c.b16 %v206, %v205
    %v222 = vpack.c.b16 %v208, %v207
    %v223 = vpack.c.b16 %v210, %v209
    %v224 = vpack.c.b16 %v212, %v211
    %v225 = vpack.c.b16 %v214, %v213
    %v226 = vpack.c.b16 %v216, %v215
    %v227 = vpack.c.b16 %v218, %v217
    %v228 = vpack.c.b16 %v220, %v219
    %237 = vmatprep.subr.bf16.mxu0 0
    %238 = vmatpush1.bf16.msra.mxu0 %v221
    %239 = vmatprep.subr.bf16.mxu0 0
    %240 = vmatpush1.bf16.msra.mxu0 %v222
    %241 = vmatprep.subr.bf16.mxu0 0
    %242 = vmatpush1.bf16.msra.mxu0 %v223
    %243 = vmatprep.subr.bf16.mxu0 0
    %244 = vmatpush1.bf16.msra.mxu0 %v224
    %245 = vmatprep.subr.bf16.mxu0 0
    %246 = vmatpush1.bf16.msra.mxu0 %v225
    %247 = vmatprep.subr.bf16.mxu0 0
    %248 = vmatpush1.bf16.msra.mxu0 %v226
    %249 = vmatprep.subr.bf16.mxu0 0
    %250 = vmatpush1.bf16.msra.mxu0 %v227
    %251 = vmatprep.subr.bf16.mxu0 0
    %252 = vmatpush1.bf16.msra.mxu0 %v228
    %253 = vmatprep.subr.bf16.mxu0 0
    %254 = vmatpush1.bf16.msra.mxu0 0
    %255 = vmatprep.subr.bf16.mxu0 0
    %256 = vmatpush1.bf16.msra.mxu0 0
    %257 = vmatprep.subr.bf16.mxu0 0
    %258 = vmatpush1.bf16.msra.mxu0 0
    %259 = vmatprep.subr.bf16.mxu0 0
    %260 = vmatpush1.bf16.msra.mxu0 0
    %261 = vmatprep.subr.bf16.mxu0 0
    %262 = vmatpush1.bf16.msra.mxu0 0
    %263 = vmatprep.subr.bf16.mxu0 0
    %264 = vmatpush1.bf16.msra.mxu0 0
    %265 = vmatprep.subr.bf16.mxu0 0
    %266 = vmatpush1.bf16.msra.mxu0 0
    %267 = vmatprep.subr.bf16.mxu0 0
    %268 = vmatpush1.bf16.msra.mxu0 0
    %269 = vmatprep.mubr.bf16.mxu0 0
    %270 = vmatmul.mubr.bf16.gmra.mrb[0].mxu0 %v171
    %v271 = vpop.f32.mrb[0].mxu0
    %v272 = vadd.f32 0.0, %v271
    %v273 = vpop.f32.mrb[0].mxu0
    %v274 = vpop.f32.mrb[0].mxu0
    %v275 = vpop.f32.mrb[0].mxu0
    %276 = vdwg.mxu0
    %v277 = vld [vmem:[%s2 + $0x2] sm:$0x1]
    %v278 = vld [vmem:[%s2 + $0x3] sm:$0x1]
    %v279 = vrot.slane %v272, 4
    %v280 = vadd.f32 %v272, %v279
    %v281 = vrot.slane %v280, 2
    %v282 = vadd.f32 %v280, %v281
    %v283 = vrot.slane %v282, 1
    %v284 = vadd.f32 %v282, %v283
    %v285 = vmul.f32 %v284, %v142
    %v286 = vmul.f32 %v272, %v272
    %v287 = vrot.slane %v286, 4
    %v288 = vadd.f32 %v286, %v287
    %v289 = vrot.slane %v288, 2
    %v290 = vadd.f32 %v288, %v289
    %v291 = vrot.slane %v290, 1
    %v292 = vadd.f32 %v290, %v291
    %v293 = vmul.f32 %v292, %v142
    %v294 = vmul.f32 %v285, %v285
    %v295 = vsub.f32 %v293, %v294
    %v296 = vmax.f32 %v295, 0.0
    %v297 = vadd.f32 %v296, 1e-05
    %v298 = vrsqrt.pop %v297
    %v299 = vmul.f32 %v277, %v298
    %v300 = vmul.f32 %v285, %v299
    %v301 = vsub.f32 %v278, %v300
    %v302 = vlaneseq
    %v303 = vshrl.u32 %v302, 7
    %v304 = vsub.s32 0, %v303
    %v305 = vrot.slane %v299, %v304
    %v306 = vmul.f32 %v272, %v305
    %v307 = vlaneseq
    %v308 = vshrl.u32 %v307, 7
    %v309 = vsub.s32 0, %v308
    %v310 = vrot.slane %v301, %v309
    %v311 = vadd.f32 %v306, %v310
    %v312 = vmax.f32 %v311, 0.0
    %v313 = vpack.c.bf16 %v312, %v312
    %s314 = scalar_lea.vmem [#allocation2], 128
    %v315 = vld [vmem:[%s314] sm:$0xf]
    %v316 = vld [vmem:[%s314 + $0x4] sm:$0xf]
    %v317 = vld [vmem:[%s314 + $0x8] sm:$0xf]
    %v318 = vld [vmem:[%s314 + $0xc] sm:$0xf]
    %v319 = vld [vmem:[%s314 + $0x10] sm:$0xf]
    %v320 = vld [vmem:[%s314 + $0x14] sm:$0xf]
    %v321 = vld [vmem:[%s314 + $0x18] sm:$0xf]
    %v322 = vld [vmem:[%s314 + $0x1c] sm:$0xf]
    %v323 = vld [vmem:[%s314 + $0x20] sm:$0xf]
    %v324 = vld [vmem:[%s314 + $0x24] sm:$0xf]
    %v325 = vld [vmem:[%s314 + $0x28] sm:$0xf]
    %v326 = vld [vmem:[%s314 + $0x2c] sm:$0xf]
    %v327 = vld [vmem:[%s314 + $0x30] sm:$0xf]
    %v328 = vld [vmem:[%s314 + $0x34] sm:$0xf]
    %v329 = vld [vmem:[%s314 + $0x38] sm:$0xf]
    %v330 = vld [vmem:[%s314 + $0x3c] sm:$0xf]
    %v347 = vunpack.c.l.b16 %v315
    %v348 = vunpack.c.l.b16 %v316
    %v349 = vunpack.c.l.b16 %v317
    %v350 = vunpack.c.l.b16 %v318
    %v351 = vunpack.c.l.b16 %v319
    %v352 = vunpack.c.l.b16 %v320
    %v353 = vunpack.c.l.b16 %v321
    %v354 = vunpack.c.l.b16 %v322
    %v355 = vunpack.c.l.b16 %v323
    %v356 = vunpack.c.l.b16 %v324
    %v357 = vunpack.c.l.b16 %v325
    %v358 = vunpack.c.l.b16 %v326
    %v359 = vunpack.c.l.b16 %v327
    %v360 = vunpack.c.l.b16 %v328
    %v361 = vunpack.c.l.b16 %v329
    %v362 = vunpack.c.l.b16 %v330
    %v363 = vpack.c.b16 %v348, %v347
    %v364 = vpack.c.b16 %v350, %v349
    %v365 = vpack.c.b16 %v352, %v351
    %v366 = vpack.c.b16 %v354, %v353
    %v367 = vpack.c.b16 %v356, %v355
    %v368 = vpack.c.b16 %v358, %v357
    %v369 = vpack.c.b16 %v360, %v359
    %v370 = vpack.c.b16 %v362, %v361
    %379 = vmatprep.subr.bf16.mxu0 0
    %380 = vmatpush1.bf16.msra.mxu0 %v363
    %381 = vmatprep.subr.bf16.mxu0 0
    %382 = vmatpush1.bf16.msra.mxu0 %v364
    %383 = vmatprep.subr.bf16.mxu0 0
    %384 = vmatpush1.bf16.msra.mxu0 %v365
    %385 = vmatprep.subr.bf16.mxu0 0
    %386 = vmatpush1.bf16.msra.mxu0 %v366
    %387 = vmatprep.subr.bf16.mxu0 0
    %388 = vmatpush1.bf16.msra.mxu0 %v367
    %389 = vmatprep.subr.bf16.mxu0 0
    %390 = vmatpush1.bf16.msra.mxu0 %v368
    %391 = vmatprep.subr.bf16.mxu0 0
    %392 = vmatpush1.bf16.msra.mxu0 %v369
    %393 = vmatprep.subr.bf16.mxu0 0
    %394 = vmatpush1.bf16.msra.mxu0 %v370
    %395 = vmatprep.subr.bf16.mxu0 0
    %396 = vmatpush1.bf16.msra.mxu0 0
    %397 = vmatprep.subr.bf16.mxu0 0
    %398 = vmatpush1.bf16.msra.mxu0 0
    %399 = vmatprep.subr.bf16.mxu0 0
    %400 = vmatpush1.bf16.msra.mxu0 0
    %401 = vmatprep.subr.bf16.mxu0 0
    %402 = vmatpush1.bf16.msra.mxu0 0
    %403 = vmatprep.subr.bf16.mxu0 0
    %404 = vmatpush1.bf16.msra.mxu0 0
    %405 = vmatprep.subr.bf16.mxu0 0
    %406 = vmatpush1.bf16.msra.mxu0 0
    %407 = vmatprep.subr.bf16.mxu0 0
    %408 = vmatpush1.bf16.msra.mxu0 0
    %409 = vmatprep.subr.bf16.mxu0 0
    %410 = vmatpush1.bf16.msra.mxu0 0
    %411 = vmatprep.mubr.bf16.mxu0 0
    %412 = vmatmul.mubr.bf16.gmra.mrb[0].mxu0 %v313
    %v413 = vpop.f32.mrb[0].mxu0
    %v414 = vadd.f32 0.0, %v413
    %v415 = vpop.f32.mrb[0].mxu0
    %v416 = vpop.f32.mrb[0].mxu0
    %v417 = vpop.f32.mrb[0].mxu0
    %418 = vdwg.mxu0
    %v419 = vld [vmem:[%s2 + $0x4] sm:$0x1]
    %v420 = vld [vmem:[%s2 + $0x5] sm:$0x1]
    %v421 = vrot.slane %v414, 4
    %v422 = vadd.f32 %v414, %v421
    %v423 = vrot.slane %v422, 2
    %v424 = vadd.f32 %v422, %v423
    %v425 = vrot.slane %v424, 1
    %v426 = vadd.f32 %v424, %v425
    %v427 = vmul.f32 %v426, %v142
    %v428 = vmul.f32 %v414, %v414
    %v429 = vrot.slane %v428, 4
    %v430 = vadd.f32 %v428, %v429
    %v431 = vrot.slane %v430, 2
    %v432 = vadd.f32 %v430, %v431
    %v433 = vrot.slane %v432, 1
    %v434 = vadd.f32 %v432, %v433
    %v435 = vmul.f32 %v434, %v142
    %v436 = vmul.f32 %v427, %v427
    %v437 = vsub.f32 %v435, %v436
    %v438 = vmax.f32 %v437, 0.0
    %v439 = vadd.f32 %v438, 1e-05
    %v440 = vrsqrt.pop %v439
    %v441 = vmul.f32 %v419, %v440
    %v442 = vmul.f32 %v427, %v441
    %v443 = vsub.f32 %v420, %v442
    %v444 = vlaneseq
    %v445 = vshrl.u32 %v444, 7
    %v446 = vsub.s32 0, %v445
    %v447 = vrot.slane %v441, %v446
    %v448 = vmul.f32 %v414, %v447
    %v449 = vlaneseq
    %v450 = vshrl.u32 %v449, 7
    %v451 = vsub.s32 0, %v450
    %v452 = vrot.slane %v443, %v451
    %v453 = vadd.f32 %v448, %v452
    %v454 = vmax.f32 %v453, 0.0
    %v455 = vpack.c.bf16 %v454, %v454
    %s456 = scalar_lea.vmem [#allocation2], 192
    %v457 = vld [vmem:[%s456] sm:$0xf]
    %v458 = vld [vmem:[%s456 + $0x4] sm:$0xf]
    %v459 = vld [vmem:[%s456 + $0x8] sm:$0xf]
    %v460 = vld [vmem:[%s456 + $0xc] sm:$0xf]
    %v461 = vld [vmem:[%s456 + $0x10] sm:$0xf]
    %v462 = vld [vmem:[%s456 + $0x14] sm:$0xf]
    %v463 = vld [vmem:[%s456 + $0x18] sm:$0xf]
    %v464 = vld [vmem:[%s456 + $0x1c] sm:$0xf]
    %v465 = vld [vmem:[%s456 + $0x20] sm:$0xf]
    %v466 = vld [vmem:[%s456 + $0x24] sm:$0xf]
    %v467 = vld [vmem:[%s456 + $0x28] sm:$0xf]
    %v468 = vld [vmem:[%s456 + $0x2c] sm:$0xf]
    %v469 = vld [vmem:[%s456 + $0x30] sm:$0xf]
    %v470 = vld [vmem:[%s456 + $0x34] sm:$0xf]
    %v471 = vld [vmem:[%s456 + $0x38] sm:$0xf]
    %v472 = vld [vmem:[%s456 + $0x3c] sm:$0xf]
    %v473 = vld [vmem:[%s2 + $0x6] sm:$0x1]
    %v474 = vlaneseq
    %v475 = vshrl.u32 %v474, 7
    %v476 = vsub.s32 0, %v475
    %v477 = vrot.slane %v473, %v476
    %v494 = vunpack.c.l.b16 %v457
    %v495 = vunpack.c.l.b16 %v458
    %v496 = vunpack.c.l.b16 %v459
    %v497 = vunpack.c.l.b16 %v460
    %v498 = vunpack.c.l.b16 %v461
    %v499 = vunpack.c.l.b16 %v462
    %v500 = vunpack.c.l.b16 %v463
    %v501 = vunpack.c.l.b16 %v464
    %v502 = vunpack.c.l.b16 %v465
    %v503 = vunpack.c.l.b16 %v466
    %v504 = vunpack.c.l.b16 %v467
    %v505 = vunpack.c.l.b16 %v468
    %v506 = vunpack.c.l.b16 %v469
    %v507 = vunpack.c.l.b16 %v470
    %v508 = vunpack.c.l.b16 %v471
    %v509 = vunpack.c.l.b16 %v472
    %v510 = vpack.c.b16 %v495, %v494
    %v511 = vpack.c.b16 %v497, %v496
    %v512 = vpack.c.b16 %v499, %v498
    %v513 = vpack.c.b16 %v501, %v500
    %v514 = vpack.c.b16 %v503, %v502
    %v515 = vpack.c.b16 %v505, %v504
    %v516 = vpack.c.b16 %v507, %v506
    %v517 = vpack.c.b16 %v509, %v508
    %526 = vmatprep.subr.bf16.mxu0 0
    %527 = vmatpush1.bf16.msra.mxu0 %v510
    %528 = vmatprep.subr.bf16.mxu0 0
    %529 = vmatpush1.bf16.msra.mxu0 %v511
    %530 = vmatprep.subr.bf16.mxu0 0
    %531 = vmatpush1.bf16.msra.mxu0 %v512
    %532 = vmatprep.subr.bf16.mxu0 0
    %533 = vmatpush1.bf16.msra.mxu0 %v513
    %534 = vmatprep.subr.bf16.mxu0 0
    %535 = vmatpush1.bf16.msra.mxu0 %v514
    %536 = vmatprep.subr.bf16.mxu0 0
    %537 = vmatpush1.bf16.msra.mxu0 %v515
    %538 = vmatprep.subr.bf16.mxu0 0
    %539 = vmatpush1.bf16.msra.mxu0 %v516
    %540 = vmatprep.subr.bf16.mxu0 0
    %541 = vmatpush1.bf16.msra.mxu0 %v517
    %542 = vmatprep.subr.bf16.mxu0 0
    %543 = vmatpush1.bf16.msra.mxu0 0
    %544 = vmatprep.subr.bf16.mxu0 0
    %545 = vmatpush1.bf16.msra.mxu0 0
    %546 = vmatprep.subr.bf16.mxu0 0
    %547 = vmatpush1.bf16.msra.mxu0 0
    %548 = vmatprep.subr.bf16.mxu0 0
    %549 = vmatpush1.bf16.msra.mxu0 0
    %550 = vmatprep.subr.bf16.mxu0 0
    %551 = vmatpush1.bf16.msra.mxu0 0
    %552 = vmatprep.subr.bf16.mxu0 0
    %553 = vmatpush1.bf16.msra.mxu0 0
    %554 = vmatprep.subr.bf16.mxu0 0
    %555 = vmatpush1.bf16.msra.mxu0 0
    %556 = vmatprep.subr.bf16.mxu0 0
    %557 = vmatpush1.bf16.msra.mxu0 0
    %558 = vmatprep.mubr.bf16.mxu0 0
    %559 = vmatmul.mubr.bf16.gmra.mrb[0].mxu0 %v455
    %v560 = vpop.f32.mrb[0].mxu0
    %v561 = vadd.f32 %v477, %v560
    %v562 = vpop.f32.mrb[0].mxu0
    %v563 = vpop.f32.mrb[0].mxu0
    %v564 = vpop.f32.mrb[0].mxu0
    %565 = vdwg.mxu0
    %566 = vst [vmem:[%s3] sm:$0xff] %v561
    // Predicated region
    $region18: #{_forward.1} parent=1 // pred_check
      _
    $region19: #{_forward.1} parent=1 // pred_check_branch
      %568 = sbr.rel (0) target = $region21
    $region20: #{_forward.1} parent=1 // pred_region
      _
    $region21: #{_forward.1} parent=1 // pred_fallthru
      _
    // Predicated region
    $region22: #{_forward.1} parent=1 // pred_check
      _
    $region23: #{_forward.1} parent=1 // pred_check_branch
      %570 = sbr.rel (0) target = $region25
    $region24: #{_forward.1} parent=1 // pred_region
      _
    $region25: #{_forward.1} parent=1 // pred_fallthru
      _
    %571 = vsyncpa [#allocation3], 1

</llo_original>
